<compile_context>
chip_gen: v5e
topology: v5e:2x2
jax: 0.10.0
libtpu: 0.0.40
codegen_flags: <defaults>
</compile_context>

<pallas_src>
import functools

import jax
import jax.numpy as jnp
from jax.experimental import pallas as pl
from jax.experimental.pallas import tpu as pltpu


# ----------------------------------------------------------------------------
# Pallas kernel
# ----------------------------------------------------------------------------
def _swish_kernel(x_ref, o_ref, *, beta):
    x = x_ref[...].astype(jnp.float32)
    z = beta * x
    # sigmoid(z) = 1 / (1 + exp(-z)); exp -> EUP, approx reciprocal -> EUP,
    # keeping the VALU/vst slots free.  Limits are correct: z -> -inf gives
    # exp(-z)=inf -> recip 0 -> out 0; z -> +inf gives exp(-z)=0 -> recip 1 -> out x.
    sig = pl.reciprocal(1.0 + jnp.exp(-z), approx=True)
    o_ref[...] = (x * sig).astype(o_ref.dtype)


# ----------------------------------------------------------------------------
# Wrapper
# ----------------------------------------------------------------------------
def swish(x, beta=1.0, *, max_block_rows=1024):
    """x * sigmoid(beta * x), elementwise, for arbitrary input shape/dtype."""
    orig_shape = x.shape
    orig_dtype = x.dtype
    lane = 128

    n = x.size
    xf = x.reshape(-1)

    rows = -(-n // lane)                       # ceil(n / 128)
    if rows <= max_block_rows:
        rows_padded = ((rows + 7) // 8) * 8    # sublane-align; single full block
        blk = rows_padded
    else:
        rows_padded = ((rows + max_block_rows - 1) // max_block_rows) * max_block_rows
        blk = max_block_rows

    pad = rows_padded * lane - n
    if pad:
        xf = jnp.pad(xf, (0, pad))
    x2 = xf.reshape(rows_padded, lane)

    out2 = pl.pallas_call(
        functools.partial(_swish_kernel, beta=float(beta)),
        out_shape=jax.ShapeDtypeStruct((rows_padded, lane), orig_dtype),
        grid=(rows_padded // blk,),
        in_specs=[pl.BlockSpec((blk, lane), lambda i: (i, 0))],
        out_specs=pl.BlockSpec((blk, lane), lambda i: (i, 0)),
        compiler_params=pltpu.CompilerParams(dimension_semantics=("parallel",)),
    )(x2)

    out_flat = out2.reshape(-1)
    if pad:
        out_flat = out_flat[:n]
    return out_flat.reshape(orig_shape)


class Swish:
    """Mirror of the PyTorch module: Swish(beta).__call__(x)."""

    def __init__(self, beta=1.0):
        self.beta = float(beta)

    def __call__(self, x):
        return swish(x, self.beta)


# ----------------------------------------------------------------------------
# Example / smoke test
# ----------------------------------------------------------------------------
if __name__ == "__main__":
    key = jax.random.PRNGKey(0)
    B, C, H, W = 2, 4, 16, 16
    x = jax.random.normal(key, (B, C, H, W), jnp.float32)

    module = Swish(beta=1.0)
    y = module(x)
    jax.block_until_ready(y)

    # Reference check (loose tolerance: approx EUP reciprocal is used in-kernel).
    ref = x * jax.nn.sigmoid(1.0 * x)
    assert y.shape == x.shape
    assert jnp.allclose(y, ref, atol=5e-3, rtol=5e-3), float(jnp.max(jnp.abs(y - ref)))

    # Also exercise the multi-block (grid > 1, "parallel") path and beta != 1.
    key2 = jax.random.PRNGKey(1)
    xb = jax.random.normal(key2, (4, 512, 257), jnp.float32)   # non-128-divisible size
    yb = swish(xb, beta=0.7)
    jax.block_until_ready(yb)
    refb = xb * jax.nn.sigmoid(0.7 * xb)
    assert jnp.allclose(yb, refb, atol=5e-3, rtol=5e-3), float(jnp.max(jnp.abs(yb - refb)))

    print("KERNEL_OK")
</pallas_src>

<mosaic_0001>
module attributes {stable_mosaic.version = 11 : i64} {
  func.func @_swish_kernel(%arg0: i32, %arg1: memref<16x128xf32, #tpu.memory_space<vmem>>, %arg2: memref<16x128xf32, #tpu.memory_space<vmem>>) attributes {dimension_semantics = [#tpu.dimension_semantics<parallel>], iteration_bounds = array<i64: 1>, scalar_prefetch = 0 : i64, scratch_operands = 0 : i64, tpu.core_type = #tpu.core_type<tc>, window_params = [{transform_indices = @transform_0, window_bounds = array<i64: 16, 128>}, {transform_indices = @transform_1, window_bounds = array<i64: 16, 128>}]} {
    %c0 = arith.constant 0 : index
    %c0_0 = arith.constant 0 : index
    %0 = vector.load %arg1[%c0, %c0_0] : memref<16x128xf32, #tpu.memory_space<vmem>>, vector<16x128xf32>
    %cst = arith.constant 1.000000e+00 : f32
    %1 = vector.broadcast %cst : f32 to vector<16x128xf32>
    %2 = arith.mulf %1, %0 : vector<16x128xf32>
    %cst_1 = arith.constant 0.000000e+00 : f32
    %3 = vector.broadcast %cst_1 : f32 to vector<16x128xf32>
    %4 = arith.subf %3, %2 : vector<16x128xf32>
    %5 = math.exp %4 : vector<16x128xf32>
    %cst_2 = arith.constant 1.000000e+00 : f32
    %6 = vector.broadcast %cst_2 : f32 to vector<16x128xf32>
    %7 = arith.addf %6, %5 : vector<16x128xf32>
    %8 = tpu.reciprocal %7 {approx = true} : vector<16x128xf32> -> vector<16x128xf32>
    %9 = arith.mulf %0, %8 : vector<16x128xf32>
    %c0_3 = arith.constant 0 : index
    %c0_4 = arith.constant 0 : index
    %10 = vector.load %arg2[%c0_3, %c0_4] : memref<16x128xf32, #tpu.memory_space<vmem>>, vector<16x128xf32>
    tpu.vector_store %arg2[%c0_3, %c0_4], %9 {strides = array<i32>} : memref<16x128xf32, #tpu.memory_space<vmem>>, vector<16x128xf32>,
    return
  }
  func.func @transform_0(%arg0: i32) -> (i32, i32) {
    %c0_i32 = arith.constant 0 : i32
    %c0_i32_0 = arith.constant 0 : i32
    return %arg0, %c0_i32 : i32, i32
  }
  func.func @transform_1(%arg0: i32) -> (i32, i32) {
    %c0_i32 = arith.constant 0 : i32
    %c0_i32_0 = arith.constant 0 : i32
    return %arg0, %c0_i32 : i32, i32
  }
}

</mosaic_0001>

<llo_original>
// kernel: tpu_custom_call.1
$region0: #{tpu_custom_call.1}
  #allocation0 [shape = 'u32[]', space=smem, size = 0x4, offset = 0x4, fixed_abs, tag = 'smem constant byte address 0x4 - core index']
  #allocation1 [shape = 'u32[72,128]{1,0:T(1,128)}', space=vmem, size = 0x9000, scoped, tag = 'internal scratch']
  %s0 = inlined_call_operand.hbm [shape: f32[16,128], index: 0, kind: input, shape index: {}]
  %s1 = inlined_call_operand.hbm [shape: f32[16,128], index: 1, kind: output, shape index: {}]
  %s2 = sld [smem:[#allocation0]]
  $region18: #{tpu_custom_call.1} parent=0
    _
  %s4 = ssub.s32 1, %s2
  %s5 = scalar_select 0, %s4, %s2
  $region1: #{tpu_custom_call.1} parent=0
    #allocation2 [shape = 'u8[8192]{0}', space=vmem, size = 0x2000, scoped, tag = 'input window, operand 0, single buffered']
    #allocation3 [shape = 's32[1]{0}', space=sflag, size = 0x4, scoped, tag = 'scoped memory for tpu_custom_call.1']
    #allocation4 [shape = 's32[1]{0}', space=sflag, size = 0x4, scoped, tag = 'scoped memory for tpu_custom_call.1']
    #allocation5 [shape = 'u8[8192]{0}', space=vmem, size = 0x2000, scoped, tag = 'output window, operand 0, single buffered']
    %6 = vsyncpa [#allocation3], 0
    %7 = vsyncpa [#allocation4], 0
    // Predicated region
    $region2: #{tpu_custom_call.1} parent=1 // pred_check
      _
    $region3: #{tpu_custom_call.1} parent=1 // pred_check_branch
      %9 = sbr.rel (0) target = $region5
    $region4: #{tpu_custom_call.1} parent=1 // pred_region
      %11 = vsyncadd [#allocation3], 0
      %s12 = sshll.u32 %s0, 4
      %s13 = int_to_ptr.hbm [resolvable:$true] %s12
      %s14 = sshll.u32 [#allocation2], 4
      %s15 = int_to_ptr.vmem [resolvable:$true] %s14
      %20 = dma.hbm_to_vmem [thread:$0]  %s13, 256, %s15, [#allocation3], 128, 128, 8
    $region5: #{tpu_custom_call.1} parent=1 // pred_fallthru
      _
    // Predicated region
    $region6: #{tpu_custom_call.1} parent=1 // pred_check
      _
    $region7: #{tpu_custom_call.1} parent=1 // pred_check_branch
      %22 = sbr.rel (0) target = $region9
    $region8: #{tpu_custom_call.1} parent=1 // pred_region
      %24 = dma.done [#allocation3], 256
    $region9: #{tpu_custom_call.1} parent=1 // pred_fallthru
      _
    %v25 = vld [vmem:[#allocation2] sm:$0xff]
    %v26 = vld [vmem:[#allocation2 + $0x8] sm:$0xff]
    %v27 = vsub.f32 0.0, %v25
    %v28 = vsub.f32 0.0, %v26
    %v29 = vmul.f32 %v27, 1.442695
    %v30 = vpow.pop %v29
    %v31 = vmul.f32 %v28, 1.442695
    %v32 = vpow.pop %v31
    %v33 = vadd.f32 %v30, 1.0
    %v34 = vadd.f32 %v32, 1.0
    %v35 = vrcp.pop %v33
    %v36 = vrcp.pop %v34
    %v37 = vmul.f32 %v25, %v35
    %v38 = vmul.f32 %v26, %v36
    %39 = vst [vmem:[#allocation5] sm:$0xff] %v37
    %40 = vst [vmem:[#allocation5 + $0x8] sm:$0xff] %v38
    // Predicated region
    $region10: #{tpu_custom_call.1} parent=1 // pred_check
      _
    $region11: #{tpu_custom_call.1} parent=1 // pred_check_branch
      %42 = sbr.rel (0) target = $region13
    $region12: #{tpu_custom_call.1} parent=1 // pred_region
      %44 = vsyncadd [#allocation4], 0
      %s45 = sshll.u32 [#allocation5], 4
      %s46 = int_to_ptr.vmem [resolvable:$true] %s45
      %s47 = sshll.u32 %s1, 4
      %s48 = int_to_ptr.hbm [resolvable:$true] %s47
      %53 = dma.vmem_to_hbm [thread:$0]  %s46, 256, %s48, [#allocation4], 128, 128, 8
    $region13: #{tpu_custom_call.1} parent=1 // pred_fallthru
      _
    // Predicated region
    $region14: #{tpu_custom_call.1} parent=1 // pred_check
      _
    $region15: #{tpu_custom_call.1} parent=1 // pred_check_branch
      %55 = sbr.rel (0) target = $region17
    $region16: #{tpu_custom_call.1} parent=1 // pred_region
      %57 = dma.done [#allocation4], 256
    $region17: #{tpu_custom_call.1} parent=1 // pred_fallthru
      _
    %58 = vsyncpa [#allocation3], 1
    %59 = vsyncpa [#allocation4], 1

</llo_original>
